<compile_context>
chip_gen: v7x
topology: tpu7x:2x2x1
jax: 0.10.0
libtpu: 0.0.40
codegen_flags: <defaults>
</compile_context>

<pallas_src>
import functools

import jax
import jax.numpy as jnp
from jax.experimental import pallas as pl
from jax.experimental.pallas import tpu as pltpu

ALPHA = 0.3
BETA = 0.7
GAMMA = 0.75

LANE = 128
SUBLANE = 8
ROW_ALIGN = 32          # supports int8 (32,128), bf16 (16,128) and f32 (8,128) tiles


def _round_up(x, m):
    return ((x + m - 1) // m) * m


def _default_num_cores():
    """2 on 2-TensorCore parts (v7x), 1 on single-TC parts (v5e/v6e).

    On a 1-TC chip a 2-way split only creates clamped/masked overhang tiles
    and extra HBM traffic for nothing, so default to 1 unless we positively
    identify a multi-TC device.
    """
    try:
        kind = jax.devices()[0].device_kind.lower()
    except Exception:
        return 1
    return 2 if ("v7" in kind or "7x" in kind) else 1


def _partial_sums_kernel(x_ref, t_ref, o_ref, acc_ref, *,
                         tiles_per_core, tile_rows, rows, full_tiles,
                         needs_mask, acc_rows, approx_sigmoid):
    """Accumulates per-core partial sums of (p*t, p, t).

    acc_ref: VMEM (3, acc_rows, 128) f32 accumulator persisting across the
             reduction (second) grid axis. o_ref is the matching block of the
             (ncores*3, acc_rows, 128) partial-sum output, written on the last
             reduction step.
    """
    j = pl.program_id(1)

    @pl.when(j == 0)
    def _():
        acc_ref[...] = jnp.zeros_like(acc_ref)

    # Native dtype is DMA'd; upcast to f32 in-register (free vs. the HBM
    # stream). Lets callers pass int8 targets / bf16 logits to shrink traffic.
    x = x_ref[...].astype(jnp.float32)
    t = t_ref[...].astype(jnp.float32)

    def sigmoid(v):
        if approx_sigmoid:
            # EUP-only variant (exp + approximate reciprocal): keeps the VALU
            # slot free. Only matters once HBM stops being the bottleneck
            # (v7x + narrow dtypes); slightly lower precision, so off by
            # default.
            return pl.reciprocal(1.0 + jnp.exp(-v), approx=True)
        return jax.nn.sigmoid(v)

    def accumulate(p, tv):
        pt = p * tv
        if acc_rows == SUBLANE:
            # Sublane-aligned partial sums: (tile_rows,128) -> (k,8,128)
            # reduced over the leading axis (pure VPU vreg adds). The
            # cross-lane reduction to scalars is deferred to the wrapper.
            acc_ref[0] += jnp.sum(pt.reshape(-1, SUBLANE, LANE), axis=0)
            acc_ref[1] += jnp.sum(p.reshape(-1, SUBLANE, LANE), axis=0)
            acc_ref[2] += jnp.sum(tv.reshape(-1, SUBLANE, LANE), axis=0)
        else:
            # Tiny-input fallback (tile_rows not a multiple of 8).
            acc_ref[0] += jnp.sum(pt, axis=0, keepdims=True)
            acc_ref[1] += jnp.sum(p, axis=0, keepdims=True)
            acc_ref[2] += jnp.sum(tv, axis=0, keepdims=True)

    if not needs_mask:
        # Exact-cover case: no mask anywhere on the hot path.
        accumulate(sigmoid(x), t)
    else:
        tile_id = pl.program_id(0) * tiles_per_core + j
        is_partial = tile_id >= full_tiles   # partial tail or overhang tile

        @pl.when(tile_id < full_tiles)
        def _():
            # Fast path: fully in-bounds block, no iota/select work.
            accumulate(sigmoid(x), t)

        @pl.when(is_partial)
        def _():
            # Row-level mask (no per-element global index -> no i32 overflow).
            # valid_rows <= 0 for fully-overhang tiles, masking everything.
            valid_rows = rows - tile_id * tile_rows
            row = jax.lax.broadcasted_iota(jnp.int32, x.shape, 0)
            m = row < valid_rows
            p = jnp.where(m, sigmoid(x), 0.0)
            tv = jnp.where(m, t, 0.0)
            accumulate(p, tv)

    @pl.when(j == pl.num_programs(1) - 1)
    def _():
        o_ref[...] = acc_ref[...]


def focal_tversky_loss(inputs, targets, smooth=1.0, alpha=ALPHA, beta=BETA,
                       gamma=GAMMA, *, max_tile_rows=4096, num_cores=None,
                       approx_sigmoid=False, buffer_count=2):
    """Pallas TPU implementation of FocalTverskyLoss.forward.

    inputs/targets may be any shape and any float / small-int dtype; targets
    are typically binary, so passing them as int8 (and optionally logits as
    bf16) cuts the HBM stream of this bandwidth-bound kernel.
    """
    x = inputs.reshape(-1)
    t = targets.reshape(-1)
    n = int(x.shape[0])

    if num_cores is None:
        num_cores = _default_num_cores()
    num_cores = max(1, int(num_cores))

    # --- Lane padding (rare: n % 128 != 0). Padded logits are -inf (sigmoid
    # -> 0) and padded targets are 0, so they contribute exactly nothing and
    # need no in-kernel mask.
    # TODO(synk): for very large ragged inputs this pad is one extra HBM pass;
    # a manual-DMA tail path would avoid it.
    rem = n % LANE
    if rem:
        pad = LANE - rem
        if not jnp.issubdtype(x.dtype, jnp.floating):
            x = x.astype(jnp.float32)
        x = jnp.pad(x, (0, pad), constant_values=-jnp.inf)
        t = jnp.pad(t, (0, pad))
    rows = x.shape[0] // LANE
    x2 = x.reshape(rows, LANE)
    t2 = t.reshape(rows, LANE)

    # --- Tiling: large blocks (per-grid-step overhead ~0.35us, so multi-MiB
    # blocks are needed to sit on the HBM roofline), rows aligned to 32 so
    # int8/bf16 inputs tile legally.
    tgt_rows = max(_round_up(max_tile_rows, ROW_ALIGN), ROW_ALIGN)
    if rows <= tgt_rows:
        tile_rows = rows                    # single block == full dim (legal)
        num_tiles = 1
    else:
        tile_rows = tgt_rows
        num_tiles = -(-rows // tile_rows)

    ncores = num_cores if num_tiles >= num_cores else 1
    tiles_per_core = -(-num_tiles // ncores)
    grid_tiles = ncores * tiles_per_core

    if grid_tiles > num_tiles:
        # Rebalance so every grid step maps to a distinct block (no clamped
        # re-read of the last multi-MiB block), if we can do so without
        # creating an entirely-empty tile.
        alt = _round_up(-(-rows // grid_tiles), ROW_ALIGN)
        if alt <= rows and (grid_tiles - 1) * alt < rows:
            tile_rows = alt
            num_tiles = grid_tiles

    full_tiles = rows // tile_rows           # tiles needing no mask
    needs_mask = grid_tiles * tile_rows != rows
    clamp_overhang = grid_tiles > num_tiles  # fallback only
    acc_rows = SUBLANE if tile_rows % SUBLANE == 0 else 1
    last_tile = num_tiles - 1

    def in_map(c, j):
        tid = c * tiles_per_core + j
        if clamp_overhang:
            # Overhang steps re-read the last valid block; their contribution
            # is zeroed by the in-kernel row mask.
            tid = jnp.minimum(tid, last_tile)
        return (tid, 0)

    kernel = functools.partial(
        _partial_sums_kernel,
        tiles_per_core=tiles_per_core, tile_rows=tile_rows, rows=rows,
        full_tiles=full_tiles, needs_mask=needs_mask, acc_rows=acc_rows,
        approx_sigmoid=approx_sigmoid)

    if buffer_count == 2:
        in_specs = [pl.BlockSpec((tile_rows, LANE), in_map),
                    pl.BlockSpec((tile_rows, LANE), in_map)]
    else:
        # Deeper buffering: only useful if profiling shows exposed DMA.
        in_specs = [pl.BlockSpec((tile_rows, LANE), in_map,
                                 pipeline_mode=pl.Buffered(buffer_count)),
                    pl.BlockSpec((tile_rows, LANE), in_map,
                                 pipeline_mode=pl.Buffered(buffer_count))]

    # Double-buffered input blocks must fit scoped VMEM; raise the limit so
    # v5e's 16 MiB default never forces a smaller tiling (v6e/v7x default 32).
    blk_bytes = tile_rows * LANE * (x2.dtype.itemsize + t2.dtype.itemsize)
    vmem_limit_bytes = int(max(32 << 20, buffer_count * blk_bytes + (2 << 20)))

    partials = pl.pallas_call(
        kernel,
        out_shape=jax.ShapeDtypeStruct((ncores * 3, acc_rows, LANE), jnp.float32),
        grid_spec=pltpu.PrefetchScalarGridSpec(
            num_scalar_prefetch=0,
            grid=(ncores, tiles_per_core),
            in_specs=in_specs,
            out_specs=pl.BlockSpec((3, acc_rows, LANE), lambda c, j: (c, 0, 0)),
            scratch_shapes=[pltpu.VMEM((3, acc_rows, LANE), jnp.float32)],
        ),
        compiler_params=pltpu.CompilerParams(
            dimension_semantics=("parallel", "arbitrary"),
            vmem_limit_bytes=vmem_limit_bytes),
    )(x2, t2)

    # Tiny epilogue (a few KiB of partials): cross-core / cross-lane reduce
    # and the Tversky formula as plain XLA scalar ops.
    sums = jnp.sum(partials.reshape(ncores, 3, acc_rows, LANE), axis=(0, 2, 3))
    tp = sums[0]                 # sum(p*t)
    fp = sums[1] - sums[0]       # sum((1-t)*p)
    fn = sums[2] - sums[0]       # sum(t*(1-p))
    tversky = (tp + smooth) / (tp + alpha * fp + beta * fn + smooth)
    base = jnp.maximum(1.0 - tversky, 0.0)   # guard pow() against tiny negatives
    return base ** gamma


def _reference(inputs, targets, smooth=1.0, alpha=ALPHA, beta=BETA, gamma=GAMMA):
    p = jax.nn.sigmoid(inputs.reshape(-1).astype(jnp.float32))
    t = targets.reshape(-1).astype(jnp.float32)
    tp = jnp.sum(p * t)
    fp = jnp.sum((1.0 - t) * p)
    fn = jnp.sum(t * (1.0 - p))
    tversky = (tp + smooth) / (tp + alpha * fp + beta * fn + smooth)
    return (1.0 - tversky) ** gamma


if __name__ == "__main__":
    key = jax.random.PRNGKey(0)
    k1, k2, k3, k4 = jax.random.split(key, 4)

    # NCHW logits and binary targets, as the segmentation head would produce.
    inputs = jax.random.normal(k1, (2, 4, 16, 16), dtype=jnp.float32)
    targets = (jax.random.uniform(k2, (2, 4, 16, 16)) > 0.5).astype(jnp.float32)

    loss = jax.block_until_ready(focal_tversky_loss(inputs, targets))
    ref = jax.block_until_ready(_reference(inputs, targets))
    assert jnp.allclose(loss, ref, rtol=1e-5, atol=1e-6), (loss, ref)

    # Narrow-dtype target stream (targets are binary): 4 B/elem -> 1 B/elem of
    # HBM, handled by the in-register cast; identical math.
    inputs2 = jax.random.normal(k3, (2, 4, 32, 16), dtype=jnp.float32)
    targets2_f = (jax.random.uniform(k4, (2, 4, 32, 16)) > 0.5).astype(jnp.float32)
    loss_i8 = jax.block_until_ready(
        focal_tversky_loss(inputs2, targets2_f.astype(jnp.int8)))
    ref2 = jax.block_until_ready(_reference(inputs2, targets2_f))
    assert jnp.allclose(loss_i8, ref2, rtol=1e-5, atol=1e-6), (loss_i8, ref2)

    print("KERNEL_OK")
</pallas_src>

<mosaic_0001>
module attributes {stable_mosaic.version = 11 : i64} {
  func.func @_partial_sums_kernel(%arg0: i32, %arg1: i32, %arg2: memref<16x128xf32, #tpu.memory_space<vmem>>, %arg3: memref<16x128xf32, #tpu.memory_space<vmem>>, %arg4: memref<3x8x128xf32, #tpu.memory_space<vmem>>, %arg5: memref<3x8x128xf32, #tpu.memory_space<vmem>>) attributes {dimension_semantics = [#tpu.dimension_semantics<parallel>, #tpu.dimension_semantics<arbitrary>], iteration_bounds = array<i64: 1, 1>, scalar_prefetch = 0 : i64, scratch_operands = 1 : i64, tpu.core_type = #tpu.core_type<tc>, window_params = [{transform_indices = @transform_0, window_bounds = array<i64: 16, 128>}, {transform_indices = @transform_1, window_bounds = array<i64: 16, 128>}, {transform_indices = @transform_2, window_bounds = array<i64: 3, 8, 128>}]} {
    %c0_i32 = arith.constant 0 : i32
    %0 = arith.cmpi eq, %arg1, %c0_i32 : i32
    %1 = arith.extui %0 : i1 to i32
    %c0_i32_0 = arith.constant 0 : i32
    %2 = arith.cmpi ne, %1, %c0_i32_0 : i32
    scf.if %2 {
      %cst_25 = arith.constant 0.000000e+00 : f32
      %38 = vector.broadcast %cst_25 : f32 to vector<3x8x128xf32>
      %c0_26 = arith.constant 0 : index
      %c0_27 = arith.constant 0 : index
      %c0_28 = arith.constant 0 : index
      %39 = vector.load %arg5[%c0_26, %c0_27, %c0_28] : memref<3x8x128xf32, #tpu.memory_space<vmem>>, vector<3x8x128xf32>
      tpu.vector_store %arg5[%c0_26, %c0_27, %c0_28], %38 {strides = array<i32>} : memref<3x8x128xf32, #tpu.memory_space<vmem>>, vector<3x8x128xf32>,
    } else {
    }
    %c0 = arith.constant 0 : index
    %c0_1 = arith.constant 0 : index
    %3 = vector.load %arg2[%c0, %c0_1] : memref<16x128xf32, #tpu.memory_space<vmem>>, vector<16x128xf32>
    %c0_2 = arith.constant 0 : index
    %c0_3 = arith.constant 0 : index
    %4 = vector.load %arg3[%c0_2, %c0_3] : memref<16x128xf32, #tpu.memory_space<vmem>>, vector<16x128xf32>
    %5 = arith.negf %3 : vector<16x128xf32>
    %6 = math.exp %5 : vector<16x128xf32>
    %cst = arith.constant 1.000000e+00 : f32
    %7 = vector.broadcast %cst : f32 to vector<16x128xf32>
    %8 = arith.addf %7, %6 : vector<16x128xf32>
    %9 = arith.divf %7, %8 : vector<16x128xf32>
    %10 = arith.mulf %9, %4 : vector<16x128xf32>
    %c0_4 = arith.constant 0 : index
    %c0_5 = arith.constant 0 : index
    %c0_6 = arith.constant 0 : index
    %11 = vector.load %arg5[%c0_4, %c0_5, %c0_6] : memref<3x8x128xf32, #tpu.memory_space<vmem>>, vector<1x8x128xf32>
    %12 = vector.shape_cast %11 : vector<1x8x128xf32> to vector<8x128xf32>
    %13 = vector.shape_cast %10 : vector<16x128xf32> to vector<2x8x128xf32>
    %cst_7 = arith.constant dense<0.000000e+00> : vector<8x128xf32>
    %14 = vector.multi_reduction <add>, %13, %cst_7 [0] : vector<2x8x128xf32> to vector<8x128xf32>
    %15 = arith.addf %12, %14 : vector<8x128xf32>
    %c0_8 = arith.constant 0 : index
    %c0_9 = arith.constant 0 : index
    %c0_10 = arith.constant 0 : index
    %16 = vector.load %arg5[%c0_8, %c0_9, %c0_10] : memref<3x8x128xf32, #tpu.memory_space<vmem>>, vector<1x8x128xf32>
    %17 = vector.shape_cast %16 : vector<1x8x128xf32> to vector<8x128xf32>
    %18 = vector.shape_cast %15 : vector<8x128xf32> to vector<1x8x128xf32>
    tpu.vector_store %arg5[%c0_8, %c0_9, %c0_10], %18 {strides = array<i32>} : memref<3x8x128xf32, #tpu.memory_space<vmem>>, vector<1x8x128xf32>,
    %c1 = arith.constant 1 : index
    %c0_11 = arith.constant 0 : index
    %c0_12 = arith.constant 0 : index
    %19 = vector.load %arg5[%c1, %c0_11, %c0_12] : memref<3x8x128xf32, #tpu.memory_space<vmem>>, vector<1x8x128xf32>
    %20 = vector.shape_cast %19 : vector<1x8x128xf32> to vector<8x128xf32>
    %21 = vector.shape_cast %9 : vector<16x128xf32> to vector<2x8x128xf32>
    %cst_13 = arith.constant dense<0.000000e+00> : vector<8x128xf32>
    %22 = vector.multi_reduction <add>, %21, %cst_13 [0] : vector<2x8x128xf32> to vector<8x128xf32>
    %23 = arith.addf %20, %22 : vector<8x128xf32>
    %c1_14 = arith.constant 1 : index
    %c0_15 = arith.constant 0 : index
    %c0_16 = arith.constant 0 : index
    %24 = vector.load %arg5[%c1_14, %c0_15, %c0_16] : memref<3x8x128xf32, #tpu.memory_space<vmem>>, vector<1x8x128xf32>
    %25 = vector.shape_cast %24 : vector<1x8x128xf32> to vector<8x128xf32>
    %26 = vector.shape_cast %23 : vector<8x128xf32> to vector<1x8x128xf32>
    tpu.vector_store %arg5[%c1_14, %c0_15, %c0_16], %26 {strides = array<i32>} : memref<3x8x128xf32, #tpu.memory_space<vmem>>, vector<1x8x128xf32>,
    %c2 = arith.constant 2 : index
    %c0_17 = arith.constant 0 : index
    %c0_18 = arith.constant 0 : index
    %27 = vector.load %arg5[%c2, %c0_17, %c0_18] : memref<3x8x128xf32, #tpu.memory_space<vmem>>, vector<1x8x128xf32>
    %28 = vector.shape_cast %27 : vector<1x8x128xf32> to vector<8x128xf32>
    %29 = vector.shape_cast %4 : vector<16x128xf32> to vector<2x8x128xf32>
    %cst_19 = arith.constant dense<0.000000e+00> : vector<8x128xf32>
    %30 = vector.multi_reduction <add>, %29, %cst_19 [0] : vector<2x8x128xf32> to vector<8x128xf32>
    %31 = arith.addf %28, %30 : vector<8x128xf32>
    %c2_20 = arith.constant 2 : index
    %c0_21 = arith.constant 0 : index
    %c0_22 = arith.constant 0 : index
    %32 = vector.load %arg5[%c2_20, %c0_21, %c0_22] : memref<3x8x128xf32, #tpu.memory_space<vmem>>, vector<1x8x128xf32>
    %33 = vector.shape_cast %32 : vector<1x8x128xf32> to vector<8x128xf32>
    %34 = vector.shape_cast %31 : vector<8x128xf32> to vector<1x8x128xf32>
    tpu.vector_store %arg5[%c2_20, %c0_21, %c0_22], %34 {strides = array<i32>} : memref<3x8x128xf32, #tpu.memory_space<vmem>>, vector<1x8x128xf32>,
    %c0_i32_23 = arith.constant 0 : i32
    %35 = arith.cmpi eq, %arg1, %c0_i32_23 : i32
    %36 = arith.extui %35 : i1 to i32
    %c0_i32_24 = arith.constant 0 : i32
    %37 = arith.cmpi ne, %36, %c0_i32_24 : i32
    scf.if %37 {
      %c0_25 = arith.constant 0 : index
      %c0_26 = arith.constant 0 : index
      %c0_27 = arith.constant 0 : index
      %38 = vector.load %arg5[%c0_25, %c0_26, %c0_27] : memref<3x8x128xf32, #tpu.memory_space<vmem>>, vector<3x8x128xf32>
      %c0_28 = arith.constant 0 : index
      %c0_29 = arith.constant 0 : index
      %c0_30 = arith.constant 0 : index
      %39 = vector.load %arg4[%c0_28, %c0_29, %c0_30] : memref<3x8x128xf32, #tpu.memory_space<vmem>>, vector<3x8x128xf32>
      tpu.vector_store %arg4[%c0_28, %c0_29, %c0_30], %38 {strides = array<i32>} : memref<3x8x128xf32, #tpu.memory_space<vmem>>, vector<3x8x128xf32>,
    } else {
    }
    return
  }
  func.func @transform_0(%arg0: i32, %arg1: i32) -> (i32, i32) {
    %c1_i32 = arith.constant 1 : i32
    %0 = arith.muli %arg0, %c1_i32 : i32
    %1 = arith.addi %0, %arg1 : i32
    %c0_i32 = arith.constant 0 : i32
    %c0_i32_0 = arith.constant 0 : i32
    return %1, %c0_i32 : i32, i32
  }
  func.func @transform_1(%arg0: i32, %arg1: i32) -> (i32, i32) {
    %c1_i32 = arith.constant 1 : i32
    %0 = arith.muli %arg0, %c1_i32 : i32
    %1 = arith.addi %0, %arg1 : i32
    %c0_i32 = arith.constant 0 : i32
    %c0_i32_0 = arith.constant 0 : i32
    return %1, %c0_i32 : i32, i32
  }
  func.func @transform_2(%arg0: i32, %arg1: i32) -> (i32, i32, i32) {
    %c0_i32 = arith.constant 0 : i32
    %c0_i32_0 = arith.constant 0 : i32
    %c0_i32_1 = arith.constant 0 : i32
    return %arg0, %c0_i32, %c0_i32_0 : i32, i32, i32
  }
}

</mosaic_0001>

<llo_original>
// kernel: tpu_custom_call.1
$region0: #{tpu_custom_call.1}
  #allocation0 [shape = 'u32[]', space=smem, size = 0x4, offset = 0x4, fixed_abs, tag = 'smem constant byte address 0x4 - core index']
  #allocation1 [shape = 'u32[144,128]{1,0:T(1,128)}', space=vmem, size = 0x12000, scoped, tag = 'internal scratch']
  #allocation2 [shape = 'f32[3,8,128]{2,1,0:T(8,128)}', space=vmem, size = 0x3000, scoped, tag = 'scratch operand']
  %s0 = inlined_call_operand.hbm [shape: f32[16,128], index: 0, kind: input, shape index: {}]
  %s1 = inlined_call_operand.hbm [shape: f32[16,128], index: 1, kind: input, shape index: {}]
  %s2 = inlined_call_operand.hbm [shape: f32[3,8,128], index: 2, kind: output, shape index: {}]
  %s3 = sld [smem:[#allocation0]]
  $region34: #{tpu_custom_call.1} parent=0
    _
  %s5 = ssub.s32 1, %s3
  %s6 = scalar_select 0, %s5, %s3
  $region1: #{tpu_custom_call.1} parent=0
    #allocation3 [shape = 'u8[8192]{0}', space=vmem, size = 0x2000, scoped, tag = 'input window, operand 0, single buffered']
    #allocation4 [shape = 's32[1]{0}', space=sflag, size = 0x4, scoped, tag = 'scoped memory for tpu_custom_call.1']
    #allocation5 [shape = 's32[1]{0}', space=sflag, size = 0x4, scoped, tag = 'scoped memory for tpu_custom_call.1']
    #allocation6 [shape = 'u8[8192]{0}', space=vmem, size = 0x2000, scoped, tag = 'input window, operand 1, single buffered']
    #allocation7 [shape = 's32[1]{0}', space=sflag, size = 0x4, scoped, tag = 'scoped memory for tpu_custom_call.1']
    #allocation8 [shape = 'u8[12288]{0}', space=vmem, size = 0x3000, scoped, tag = 'output window, operand 0, single buffered']
    %7 = vsyncpa [#allocation4], 0
    %8 = vsyncpa [#allocation7], 0
    %9 = vsyncpa [#allocation5], 0
    // Predicated region
    $region2: #{tpu_custom_call.1} parent=1 // pred_check
      _
    $region3: #{tpu_custom_call.1} parent=1 // pred_check_branch
      %11 = sbr.rel (0) target = $region5
    $region4: #{tpu_custom_call.1} parent=1 // pred_region
      %s12 = sadd.s32 0, 0
      %s13 = smul.u32 2, %s12
      %s15 = ssub.s32 256, 256
      %16 = vsyncadd [#allocation4], %s15
      %s17 = smul.addr %s13, 128
      %s18 = scalar_lea.hbm %s0, %s17
      %s19 = sshll.u32 [#allocation3], 4
      %s20 = int_to_ptr.vmem [resolvable:$true] %s19
      %25 = dma.hbm_to_vmem [thread:$0]  %s18, 256, %s20, [#allocation4], 128, 128, 8
    $region5: #{tpu_custom_call.1} parent=1 // pred_fallthru
      _
    // Predicated region
    $region6: #{tpu_custom_call.1} parent=1 // pred_check
      _
    $region7: #{tpu_custom_call.1} parent=1 // pred_check_branch
      %27 = sbr.rel (0) target = $region9
    $region8: #{tpu_custom_call.1} parent=1 // pred_region
      %s28 = sadd.s32 0, 0
      %s29 = smul.u32 2, %s28
      %s31 = ssub.s32 256, 256
      %32 = vsyncadd [#allocation7], %s31
      %s33 = smul.addr %s29, 128
      %s34 = scalar_lea.hbm %s1, %s33
      %s35 = sshll.u32 [#allocation6], 4
      %s36 = int_to_ptr.vmem [resolvable:$true] %s35
      %41 = dma.hbm_to_vmem [thread:$0]  %s34, 256, %s36, [#allocation7], 128, 128, 8
    $region9: #{tpu_custom_call.1} parent=1 // pred_fallthru
      _
    // Predicated region
    $region10: #{tpu_custom_call.1} parent=1 // pred_check
      _
    $region11: #{tpu_custom_call.1} parent=1 // pred_check_branch
      %43 = sbr.rel (0) target = $region13
    $region12: #{tpu_custom_call.1} parent=1 // pred_region
      %44 = dma.done [#allocation4], 256
    $region13: #{tpu_custom_call.1} parent=1 // pred_fallthru
      _
    // Predicated region
    $region14: #{tpu_custom_call.1} parent=1 // pred_check
      _
    $region15: #{tpu_custom_call.1} parent=1 // pred_check_branch
      %46 = sbr.rel (0) target = $region17
    $region16: #{tpu_custom_call.1} parent=1 // pred_region
      %47 = dma.done [#allocation7], 256
    $region17: #{tpu_custom_call.1} parent=1 // pred_fallthru
      _
    %s48 = sadd.s32 0, 0
    %s49 = smul.u32 2, %s48
    %s50 = sadd.s32 0, 0
    %s51 = smul.u32 2, %s50
    %p52 = scmp.eq.s32.totalorder 0, 0
    // Predicated region
    $region18: #{tpu_custom_call.1} parent=1 // pred_check
      %p53 = pneg %p52
    $region19: #{tpu_custom_call.1} parent=1 // pred_check_branch
      %55 = sbr.rel (%p53) target = $region21
    $region20: #{tpu_custom_call.1} parent=1 // pred_region
      %56 = vst [vmem:[#allocation2] sm:$0xff] 0.0
      %57 = vst [vmem:[#allocation2 + $0x8] sm:$0xff] 0.0
      %58 = vst [vmem:[#allocation2 + $0x10] sm:$0xff] 0.0
    $region21: #{tpu_custom_call.1} parent=1 // pred_fallthru
      _
    %v59 = vld [vmem:[#allocation3] sm:$0xff]
    %v60 = vld [vmem:[#allocation3 + $0x8] sm:$0xff]
    %v61 = vld [vmem:[#allocation6] sm:$0xff]
    %v62 = vld [vmem:[#allocation6 + $0x8] sm:$0xff]
    %v63 = vxor.u32 %v59, 2147483648
    %v64 = vxor.u32 %v60, 2147483648
    %v65 = vmul.f32 %v63, 1.442695
    %v66 = vpow.pop %v65
    %v67 = vmul.f32 %v64, 1.442695
    %v68 = vpow.pop %v67
    %v69 = vadd.f32 %v66, 1.0
    %v70 = vadd.f32 %v68, 1.0
    %v71 = vrcp.pop %v69
    %v72 = vmul.f32 1.0, %v71
    %v73 = vrcp.pop %v70
    %v74 = vmul.f32 1.0, %v73
    %v75 = vmul.f32 %v72, %v61
    %v76 = vmul.f32 %v74, %v62
    %v77 = vld [vmem:[#allocation2] sm:$0xff]
    %v78 = vadd.f32 %v75, %v76
    %v79 = vadd.f32 %v77, %v78
    %80 = vst [vmem:[#allocation2] sm:$0xff] %v79
    %s81 = scalar_lea.vmem [#allocation2], 8
    %v82 = vld [vmem:[%s81] sm:$0xff]
    %v83 = vadd.f32 %v72, %v74
    %v84 = vadd.f32 %v82, %v83
    %85 = vst [vmem:[%s81] sm:$0xff] %v84
    %s86 = scalar_lea.vmem [#allocation2], 16
    %v87 = vld [vmem:[%s86] sm:$0xff]
    %v88 = vadd.f32 %v61, %v62
    %v89 = vadd.f32 %v87, %v88
    %90 = vst [vmem:[%s86] sm:$0xff] %v89
    // Predicated region
    $region22: #{tpu_custom_call.1} parent=1 // pred_check
      %p91 = pneg %p52
    $region23: #{tpu_custom_call.1} parent=1 // pred_check_branch
      %93 = sbr.rel (%p91) target = $region25
    $region24: #{tpu_custom_call.1} parent=1 // pred_region
      %v94 = vld [vmem:[#allocation2] sm:$0xff]
      %v95 = vld [vmem:[#allocation2 + $0x8] sm:$0xff]
      %v96 = vld [vmem:[#allocation2 + $0x10] sm:$0xff]
      %97 = vst [vmem:[#allocation8] sm:$0xff] %v94
      %98 = vst [vmem:[#allocation8 + $0x8] sm:$0xff] %v95
      %99 = vst [vmem:[#allocation8 + $0x10] sm:$0xff] %v96
    $region25: #{tpu_custom_call.1} parent=1 // pred_fallthru
      _
    // Predicated region
    $region26: #{tpu_custom_call.1} parent=1 // pred_check
      _
    $region27: #{tpu_custom_call.1} parent=1 // pred_check_branch
      %101 = sbr.rel (0) target = $region29
    $region28: #{tpu_custom_call.1} parent=1 // pred_region
      %s103 = ssub.s32 384, 384
      %104 = vsyncadd [#allocation5], %s103
      %s105 = sshll.u32 [#allocation8], 4
      %s106 = int_to_ptr.vmem [resolvable:$true] %s105
      %111 = dma.vmem_to_hbm [thread:$0]  %s106, 384, %s2, [#allocation5], 128, 128, 8
    $region29: #{tpu_custom_call.1} parent=1 // pred_fallthru
      _
    // Predicated region
    $region30: #{tpu_custom_call.1} parent=1 // pred_check
      _
    $region31: #{tpu_custom_call.1} parent=1 // pred_check_branch
      %113 = sbr.rel (0) target = $region33
    $region32: #{tpu_custom_call.1} parent=1 // pred_region
      %114 = dma.done [#allocation5], 384
    $region33: #{tpu_custom_call.1} parent=1 // pred_fallthru
      _
    %115 = vsyncpa [#allocation4], 1
    %116 = vsyncpa [#allocation7], 1
    %117 = vsyncpa [#allocation5], 1

</llo_original>
